<compile_context>
chip_gen: v5e
topology: v5e:2x2
jax: 0.10.0
libtpu: 0.0.40
codegen_flags: <defaults>
</compile_context>

<pallas_src>
import jax
import jax.numpy as jnp
from jax.experimental import pallas as pl
from jax.experimental.pallas import tpu as pltpu


def _identity_copy_kernel(x_ref, o_ref):
    # Straight copy of the current VMEM tile.
    o_ref[...] = x_ref[...]


_TARGET_TILE_BYTES = 2 << 20   # ~2 MiB per buffer
_MAX_LANE_WIDTH = 8192         # widest 128-multiple trailing dim we try


def _choose_lane_width(total_padded: int) -> int:
    """Largest power-of-two 128-multiple (<= _MAX_LANE_WIDTH) dividing total."""
    cand = _MAX_LANE_WIDTH
    while cand > 128:
        if total_padded % cand == 0:
            return cand
        cand //= 2
    return 128  # total_padded is always a multiple of 128


def identity_pallas(x: jax.Array, *, force_kernel: bool = False,
                    alias_input: bool = False) -> jax.Array:
    """Identity forward: returns a tensor equal to x (same shape & dtype).

    Default path is a pure pass-through (optimal).  `force_kernel=True`
    runs the explicit Pallas copy kernel instead.
    """
    if not force_kernel:
        # Optimal Identity: no kernel, no reshape, no HBM traffic.
        return x

    orig_shape = x.shape
    dtype = x.dtype
    total = int(x.size)
    if total == 0:
        return x

    itemsize = int(jnp.dtype(dtype).itemsize)
    # Sublane packing: 8 rows (4-byte), 16 (2-byte), 32 (1-byte).
    sublane = max(8, 32 // max(1, itemsize))

    # ---- lane-dense flattening (pad flat length to a 128-multiple) ---------
    flat = x.reshape(-1)
    pad = (-total) % 128
    if pad:
        flat = jnp.concatenate([flat, jnp.zeros((pad,), dtype=dtype)])
    total_padded = total + pad

    C = _choose_lane_width(total_padded)
    R = total_padded // C
    x2 = flat.reshape(R, C)

    # ---- byte-sized row tile (dtype-aware, sublane-aligned) -----------------
    tr = _TARGET_TILE_BYTES // (C * itemsize)
    tr = max(sublane, (tr // sublane) * sublane)
    tr = min(tr, R)          # full-extent block when the array is small
    grid = (pl.cdiv(R, tr),)

    # Aliasing only pays off if the input buffer is donated at the jit
    # boundary; otherwise XLA inserts a defensive copy.  Off by default.
    aliases = {0: 0} if (alias_input and pad == 0) else {}

    out2 = pl.pallas_call(
        _identity_copy_kernel,
        out_shape=jax.ShapeDtypeStruct((R, C), dtype),
        grid=grid,
        in_specs=[pl.BlockSpec((tr, C), lambda i: (i, 0))],
        out_specs=pl.BlockSpec((tr, C), lambda i: (i, 0)),
        input_output_aliases=aliases,
        compiler_params=pltpu.CompilerParams(
            dimension_semantics=("parallel",),   # shards row tiles across v7x's 2 TCs
            vmem_limit_bytes=32 << 20,
        ),
    )(x2)

    out_flat = out2.reshape(-1)
    if pad:
        out_flat = out_flat[:total]
    return out_flat.reshape(orig_shape)


if __name__ == "__main__":
    key = jax.random.PRNGKey(0)
    # Small NCHW input consistent with the module's expected usage.
    x = jax.random.normal(key, (2, 4, 16, 16), dtype=jnp.float32)

    # Optimal module-level path: pure pass-through.
    y_fast = identity_pallas(x)
    assert y_fast.shape == x.shape and y_fast.dtype == x.dtype
    assert bool(jnp.array_equal(y_fast, x)), "fast path mismatch"

    # Explicit Pallas kernel path.
    y_kern = identity_pallas(x, force_kernel=True)
    jax.block_until_ready(y_kern)
    assert y_kern.shape == x.shape, f"shape mismatch: {y_kern.shape} vs {x.shape}"
    assert y_kern.dtype == x.dtype, f"dtype mismatch: {y_kern.dtype} vs {x.dtype}"
    assert bool(jnp.array_equal(y_kern, x)), "kernel output does not match input"

    # Exercise the hardened fallback (size not divisible by 128).
    x_odd = jax.random.normal(jax.random.PRNGKey(0), (3, 5, 7), dtype=jnp.float32)
    y_odd = identity_pallas(x_odd, force_kernel=True)
    jax.block_until_ready(y_odd)
    assert bool(jnp.array_equal(y_odd, x_odd)), "fallback path mismatch"

    print("KERNEL_OK")
</pallas_src>

<mosaic_0001>
module attributes {stable_mosaic.version = 11 : i64} {
  func.func @_identity_copy_kernel(%arg0: i32, %arg1: memref<1x2048xf32, #tpu.memory_space<vmem>>, %arg2: memref<1x2048xf32, #tpu.memory_space<vmem>>) attributes {dimension_semantics = [#tpu.dimension_semantics<parallel>], iteration_bounds = array<i64: 1>, scalar_prefetch = 0 : i64, scratch_operands = 0 : i64, tpu.core_type = #tpu.core_type<tc>, window_params = [{transform_indices = @transform_0, window_bounds = array<i64: 1, 2048>}, {transform_indices = @transform_1, window_bounds = array<i64: 1, 2048>}]} {
    %c0 = arith.constant 0 : index
    %c0_0 = arith.constant 0 : index
    %0 = vector.load %arg1[%c0, %c0_0] : memref<1x2048xf32, #tpu.memory_space<vmem>>, vector<1x2048xf32>
    %c0_1 = arith.constant 0 : index
    %c0_2 = arith.constant 0 : index
    %1 = vector.load %arg2[%c0_1, %c0_2] : memref<1x2048xf32, #tpu.memory_space<vmem>>, vector<1x2048xf32>
    tpu.vector_store %arg2[%c0_1, %c0_2], %0 {strides = array<i32>} : memref<1x2048xf32, #tpu.memory_space<vmem>>, vector<1x2048xf32>,
    return
  }
  func.func @transform_0(%arg0: i32) -> (i32, i32) {
    %c0_i32 = arith.constant 0 : i32
    %c0_i32_0 = arith.constant 0 : i32
    return %arg0, %c0_i32 : i32, i32
  }
  func.func @transform_1(%arg0: i32) -> (i32, i32) {
    %c0_i32 = arith.constant 0 : i32
    %c0_i32_0 = arith.constant 0 : i32
    return %arg0, %c0_i32 : i32, i32
  }
}

</mosaic_0001>

<llo_original>
// kernel: tpu_custom_call.1
$region0: #{tpu_custom_call.1}
  #allocation0 [shape = 'u32[]', space=smem, size = 0x4, offset = 0x4, fixed_abs, tag = 'smem constant byte address 0x4 - core index']
  #allocation1 [shape = 'u32[72,128]{1,0:T(1,128)}', space=vmem, size = 0x9000, scoped, tag = 'internal scratch']
  %s0 = inlined_call_operand.hbm [shape: f32[1,2048], index: 0, kind: input, shape index: {}]
  %s1 = inlined_call_operand.hbm [shape: f32[1,2048], index: 1, kind: output, shape index: {}]
  %s2 = sld [smem:[#allocation0]]
  $region18: #{tpu_custom_call.1} parent=0
    _
  %s4 = ssub.s32 1, %s2
  %s5 = scalar_select 0, %s4, %s2
  $region1: #{tpu_custom_call.1} parent=0
    #allocation2 [shape = 'u8[8192]{0}', space=vmem, size = 0x2000, scoped, tag = 'input window, operand 0, single buffered']
    #allocation3 [shape = 's32[1]{0}', space=sflag, size = 0x4, scoped, tag = 'scoped memory for tpu_custom_call.1']
    #allocation4 [shape = 's32[1]{0}', space=sflag, size = 0x4, scoped, tag = 'scoped memory for tpu_custom_call.1']
    #allocation5 [shape = 'u8[8192]{0}', space=vmem, size = 0x2000, scoped, tag = 'output window, operand 0, single buffered']
    %6 = vsyncpa [#allocation3], 0
    %7 = vsyncpa [#allocation4], 0
    // Predicated region
    $region2: #{tpu_custom_call.1} parent=1 // pred_check
      _
    $region3: #{tpu_custom_call.1} parent=1 // pred_check_branch
      %9 = sbr.rel (0) target = $region5
    $region4: #{tpu_custom_call.1} parent=1 // pred_region
      %11 = vsyncadd [#allocation3], 0
      %s13 = sshll.u32 %s0, 4
      %s14 = int_to_ptr.hbm [resolvable:$true] %s13
      %s15 = sshll.u32 [#allocation2], 4
      %s16 = int_to_ptr.vmem [resolvable:$true] %s15
      %18 = dma.hbm_to_vmem [thread:$0]  %s14, 256, %s16, [#allocation3]
    $region5: #{tpu_custom_call.1} parent=1 // pred_fallthru
      _
    // Predicated region
    $region6: #{tpu_custom_call.1} parent=1 // pred_check
      _
    $region7: #{tpu_custom_call.1} parent=1 // pred_check_branch
      %20 = sbr.rel (0) target = $region9
    $region8: #{tpu_custom_call.1} parent=1 // pred_region
      %22 = dma.done [#allocation3], 256
    $region9: #{tpu_custom_call.1} parent=1 // pred_fallthru
      _
    %v23 = vld [vmem:[#allocation2] sm:$0xff]
    %v24 = vld [vmem:[#allocation2 + $0x8] sm:$0xff]
    %25 = vst [vmem:[#allocation5] sm:$0xff] %v23
    %26 = vst [vmem:[#allocation5 + $0x8] sm:$0xff] %v24
    // Predicated region
    $region10: #{tpu_custom_call.1} parent=1 // pred_check
      _
    $region11: #{tpu_custom_call.1} parent=1 // pred_check_branch
      %28 = sbr.rel (0) target = $region13
    $region12: #{tpu_custom_call.1} parent=1 // pred_region
      %30 = vsyncadd [#allocation4], 0
      %s32 = sshll.u32 [#allocation5], 4
      %s33 = int_to_ptr.vmem [resolvable:$true] %s32
      %s34 = sshll.u32 %s1, 4
      %s35 = int_to_ptr.hbm [resolvable:$true] %s34
      %37 = dma.vmem_to_hbm [thread:$0]  %s33, 256, %s35, [#allocation4]
    $region13: #{tpu_custom_call.1} parent=1 // pred_fallthru
      _
    // Predicated region
    $region14: #{tpu_custom_call.1} parent=1 // pred_check
      _
    $region15: #{tpu_custom_call.1} parent=1 // pred_check_branch
      %39 = sbr.rel (0) target = $region17
    $region16: #{tpu_custom_call.1} parent=1 // pred_region
      %41 = dma.done [#allocation4], 256
    $region17: #{tpu_custom_call.1} parent=1 // pred_fallthru
      _
    %42 = vsyncpa [#allocation3], 1
    %43 = vsyncpa [#allocation4], 1

</llo_original>
